<compile_context>
chip_gen: v7x
topology: tpu7x:2x2x1
jax: 0.10.0
libtpu: 0.0.40
codegen_flags: <defaults>
</compile_context>

<pallas_src>
import jax
import jax.numpy as jnp
from jax.experimental import pallas as pl
from jax.experimental.pallas import tpu as pltpu

_MIB = 1024 * 1024


def _round_up(x, m):
    return ((x + m - 1) // m) * m


def _vmem_policy():
    """Return (buffer_budget_bytes, vmem_limit_bytes, min_row_steps) per chip."""
    try:
        vmem_cap = pltpu.get_tpu_info().vmem_capacity_bytes
    except Exception:
        vmem_cap = None
    if vmem_cap is not None and vmem_cap >= 100 * _MIB:
        # v5e / v6e: 128 MiB VMEM, single TensorCore -> fewest, biggest tiles.
        return 80 * _MIB, 100 * _MIB, 1
    if vmem_cap is not None:
        # v7x: 64 MiB VMEM, 2 TensorCores -> tighter budget, >= 2 parallel tiles.
        return 22 * _MIB, 44 * _MIB, 2
    # Unknown chip / query unavailable: conservative defaults valid everywhere.
    return 22 * _MIB, 44 * _MIB, 2


def _pool_unrolled_kernel(w_ref, *refs):
    # w_ref     : SMEM (n_layers,) f32, pre-normalized layer weights.
    # refs[:-1] : n_layers VMEM refs, each (TILE_M, H)  (layer dim squeezed).
    # refs[-1]  : VMEM (TILE_M, H) output.
    *x_refs, o_ref = refs
    acc = w_ref[0] * x_refs[0][...].astype(jnp.float32)
    for l in range(1, len(x_refs)):            # small & static -> unrolled VPU fma
        acc = acc + w_ref[l] * x_refs[l][...].astype(jnp.float32)
    o_ref[...] = acc.astype(o_ref.dtype)


def _pool_reduce_kernel(w_ref, x_ref, o_ref, acc_ref):
    # (rows, layers) grid, layers last / "arbitrary".
    # x_ref : VMEM (TILE_M, H) current layer's window (layer dim squeezed).
    # acc_ref: VMEM (TILE_M, H) f32 scratch accumulator, resident per row tile.
    l = pl.program_id(1)

    @pl.when(l == 0)
    def _():
        acc_ref[...] = jnp.zeros_like(acc_ref)

    acc_ref[...] += w_ref[l] * x_ref[...].astype(jnp.float32)

    @pl.when(l == pl.num_programs(1) - 1)
    def _():
        o_ref[...] = acc_ref[...].astype(o_ref.dtype)


def weighted_layer_pooling(all_hidden_states, layer_weights, layer_start=4):
    """all_hidden_states: (L_total, B, S, H); layer_weights: (L_total - layer_start,)."""
    L_total, B, S, H = all_hidden_states.shape
    n_layers = L_total - layer_start
    assert n_layers > 0
    assert layer_weights.shape == (n_layers,)

    M = B * S
    x = all_hidden_states.reshape(L_total, M, H)          # free leading-dim merge
    # Pre-normalize -> kernel is a pure multiply-accumulate.
    # (If sum(layer_weights) == 0 this yields inf/NaN, same as the PyTorch ref.)
    w = (layer_weights / jnp.sum(layer_weights)).astype(jnp.float32)

    itemsize = jnp.dtype(all_hidden_states.dtype).itemsize
    sublane = max(8, 32 // itemsize)   # sublane packing: 8 f32 / 16 bf16 / 32 int8-fp8

    budget, vmem_limit, min_steps = _vmem_policy()

    use_reduce_grid = n_layers > 4
    if use_reduce_grid:
        # 1 double-buffered input window + 1 double-buffered output window
        # + f32 accumulator + f32 widening temp, per row.
        bytes_per_row = 2 * H * itemsize + 2 * H * itemsize + 2 * H * 4
    else:
        # n_layers double-buffered input windows + double-buffered output
        # + f32 accumulator/widening temps, per row.
        bytes_per_row = 2 * n_layers * H * itemsize + 2 * H * itemsize + 2 * H * 4

    max_rows = max(sublane, (budget // bytes_per_row) // sublane * sublane)
    tile_m = max_rows
    if min_steps > 1 and M > sublane:
        # Guarantee >= min_steps row tiles so both v7x TensorCores stream.
        tile_m = min(tile_m, max(sublane, _round_up(pl.cdiv(M, min_steps), sublane)))
    if tile_m >= M:
        tile_m = M                                        # full-extent block is legal
    grid_m = pl.cdiv(M, tile_m)

    if use_reduce_grid:
        grid = (grid_m, n_layers)
        in_specs = [
            pl.BlockSpec((None, tile_m, H),
                         lambda i, l, w_sref: (layer_start + l, i, 0)),
        ]
        out_spec = pl.BlockSpec((tile_m, H), lambda i, l, w_sref: (i, 0))
        grid_spec = pltpu.PrefetchScalarGridSpec(
            num_scalar_prefetch=1,                        # normalized weights -> SMEM
            grid=grid,
            in_specs=in_specs,
            out_specs=out_spec,
            scratch_shapes=[pltpu.VMEM((tile_m, H), jnp.float32)],
        )
        kernel = _pool_reduce_kernel
        operands = (w, x)
        dim_sem = ("parallel", "arbitrary")
    else:
        grid = (grid_m,)
        in_specs = [
            pl.BlockSpec((None, tile_m, H),
                         lambda i, w_sref, l=l: (layer_start + l, i, 0))
            for l in range(n_layers)
        ]
        out_spec = pl.BlockSpec((tile_m, H), lambda i, w_sref: (i, 0))
        grid_spec = pltpu.PrefetchScalarGridSpec(
            num_scalar_prefetch=1,
            grid=grid,
            in_specs=in_specs,
            out_specs=out_spec,
        )
        kernel = _pool_unrolled_kernel
        operands = (w,) + (x,) * n_layers
        dim_sem = ("parallel",)

    out = pl.pallas_call(
        kernel,
        out_shape=jax.ShapeDtypeStruct((M, H), all_hidden_states.dtype),
        grid_spec=grid_spec,
        compiler_params=pltpu.CompilerParams(
            dimension_semantics=dim_sem,
            vmem_limit_bytes=vmem_limit,
        ),
    )(*operands)

    return out.reshape(B, S, H)                           # free leading-dim split


def _jax_reference(all_hidden_states, layer_weights, layer_start):
    emb = all_hidden_states[layer_start:]
    return (layer_weights[:, None, None, None] * emb).sum(axis=0) / layer_weights.sum()


if __name__ == "__main__":
    key = jax.random.PRNGKey(0)
    B, S, H = 2, 8, 128
    layer_start = 4

    # --- Case 1: small config (num_hidden_layers=6 -> 3 used layers) exercises
    #     the unrolled per-layer-BlockSpec path. -------------------------------
    L_total_small = 6 + 1
    k1, k2, key = jax.random.split(key, 3)
    hs_small = jax.random.normal(k1, (L_total_small, B, S, H), dtype=jnp.float32)
    w_small = jnp.array([1.0, 2.0, 0.5], dtype=jnp.float32)

    out_small = weighted_layer_pooling(hs_small, w_small, layer_start)
    out_small = jax.block_until_ready(out_small)
    ref_small = _jax_reference(hs_small, w_small, layer_start)
    assert out_small.shape == (B, S, H)
    assert jnp.allclose(out_small, ref_small, atol=1e-5, rtol=1e-5)

    # --- Case 2: BERT-style config (num_hidden_layers=12 -> 9 used layers)
    #     exercises the (rows, layers) reduction-grid path. ---------------------
    L_total_big = 12 + 1
    k3, k4 = jax.random.split(k2)
    hs_big = jax.random.normal(k3, (L_total_big, B, S, H), dtype=jnp.float32)
    w_big = jnp.linspace(0.5, 2.0, L_total_big - layer_start).astype(jnp.float32)

    out_big = weighted_layer_pooling(hs_big, w_big, layer_start)
    out_big = jax.block_until_ready(out_big)
    ref_big = _jax_reference(hs_big, w_big, layer_start)
    assert out_big.shape == (B, S, H)
    assert jnp.allclose(out_big, ref_big, atol=1e-5, rtol=1e-5)

    print("KERNEL_OK")
</pallas_src>

<mosaic_0001>
module attributes {stable_mosaic.version = 11 : i64} {
  func.func @_pool_unrolled_kernel(%arg0: i32, %arg1: memref<3xf32, #tpu.memory_space<smem>>, %arg2: memref<1x8x128xf32, #tpu.memory_space<vmem>>, %arg3: memref<1x8x128xf32, #tpu.memory_space<vmem>>, %arg4: memref<1x8x128xf32, #tpu.memory_space<vmem>>, %arg5: memref<8x128xf32, #tpu.memory_space<vmem>>) attributes {dimension_semantics = [#tpu.dimension_semantics<parallel>], iteration_bounds = array<i64: 2>, scalar_prefetch = 1 : i64, scratch_operands = 0 : i64, tpu.core_type = #tpu.core_type<tc>, window_params = [{transform_indices = @transform_0, window_bounds = array<i64: 1, 8, 128>}, {transform_indices = @transform_1, window_bounds = array<i64: 1, 8, 128>}, {transform_indices = @transform_2, window_bounds = array<i64: 1, 8, 128>}, {transform_indices = @transform_3, window_bounds = array<i64: 8, 128>}]} {
    %c0 = arith.constant 0 : index
    %0 = memref.load %arg1[%c0] : memref<3xf32, #tpu.memory_space<smem>>
    %c0_0 = arith.constant 0 : index
    %c0_1 = arith.constant 0 : index
    %c0_2 = arith.constant 0 : index
    %1 = vector.load %arg2[%c0_0, %c0_1, %c0_2] : memref<1x8x128xf32, #tpu.memory_space<vmem>>, vector<1x8x128xf32>
    %2 = vector.shape_cast %1 : vector<1x8x128xf32> to vector<8x128xf32>
    %3 = vector.broadcast %0 : f32 to vector<8x128xf32>
    %4 = arith.mulf %3, %2 : vector<8x128xf32>
    %c1 = arith.constant 1 : index
    %5 = memref.load %arg1[%c1] : memref<3xf32, #tpu.memory_space<smem>>
    %c0_3 = arith.constant 0 : index
    %c0_4 = arith.constant 0 : index
    %c0_5 = arith.constant 0 : index
    %6 = vector.load %arg3[%c0_3, %c0_4, %c0_5] : memref<1x8x128xf32, #tpu.memory_space<vmem>>, vector<1x8x128xf32>
    %7 = vector.shape_cast %6 : vector<1x8x128xf32> to vector<8x128xf32>
    %8 = vector.broadcast %5 : f32 to vector<8x128xf32>
    %9 = arith.mulf %8, %7 : vector<8x128xf32>
    %10 = arith.addf %4, %9 : vector<8x128xf32>
    %c2 = arith.constant 2 : index
    %11 = memref.load %arg1[%c2] : memref<3xf32, #tpu.memory_space<smem>>
    %c0_6 = arith.constant 0 : index
    %c0_7 = arith.constant 0 : index
    %c0_8 = arith.constant 0 : index
    %12 = vector.load %arg4[%c0_6, %c0_7, %c0_8] : memref<1x8x128xf32, #tpu.memory_space<vmem>>, vector<1x8x128xf32>
    %13 = vector.shape_cast %12 : vector<1x8x128xf32> to vector<8x128xf32>
    %14 = vector.broadcast %11 : f32 to vector<8x128xf32>
    %15 = arith.mulf %14, %13 : vector<8x128xf32>
    %16 = arith.addf %10, %15 : vector<8x128xf32>
    %c0_9 = arith.constant 0 : index
    %c0_10 = arith.constant 0 : index
    %17 = vector.load %arg5[%c0_9, %c0_10] : memref<8x128xf32, #tpu.memory_space<vmem>>, vector<8x128xf32>
    tpu.vector_store %arg5[%c0_9, %c0_10], %16 {strides = array<i32>} : memref<8x128xf32, #tpu.memory_space<vmem>>, vector<8x128xf32>,
    return
  }
  func.func @transform_0(%arg0: i32, %arg1: memref<3xf32, #tpu.memory_space<smem>>) -> (i32, i32, i32) {
    %c4_i32 = arith.constant 4 : i32
    %c0_i32 = arith.constant 0 : i32
    %c0_i32_0 = arith.constant 0 : i32
    return %c4_i32, %arg0, %c0_i32 : i32, i32, i32
  }
  func.func @transform_1(%arg0: i32, %arg1: memref<3xf32, #tpu.memory_space<smem>>) -> (i32, i32, i32) {
    %c5_i32 = arith.constant 5 : i32
    %c0_i32 = arith.constant 0 : i32
    %c0_i32_0 = arith.constant 0 : i32
    return %c5_i32, %arg0, %c0_i32 : i32, i32, i32
  }
  func.func @transform_2(%arg0: i32, %arg1: memref<3xf32, #tpu.memory_space<smem>>) -> (i32, i32, i32) {
    %c6_i32 = arith.constant 6 : i32
    %c0_i32 = arith.constant 0 : i32
    %c0_i32_0 = arith.constant 0 : i32
    return %c6_i32, %arg0, %c0_i32 : i32, i32, i32
  }
  func.func @transform_3(%arg0: i32, %arg1: memref<3xf32, #tpu.memory_space<smem>>) -> (i32, i32) {
    %c0_i32 = arith.constant 0 : i32
    %c0_i32_0 = arith.constant 0 : i32
    return %arg0, %c0_i32 : i32, i32
  }
}

</mosaic_0001>

<llo_original>
// kernel: tpu_custom_call.1
$region0: #{tpu_custom_call.1}
  #allocation0 [shape = 'u32[]', space=smem, size = 0x4, offset = 0x4, fixed_abs, tag = 'smem constant byte address 0x4 - core index']
  #allocation1 [shape = 'u32[144,128]{1,0:T(1,128)}', space=vmem, size = 0x12000, scoped, tag = 'internal scratch']
  #allocation2 [shape = 's32[1]{0}', space=sflag, size = 0x4, scoped, tag = 'scoped memory for tpu_custom_call.1']
  #allocation3 [shape = 'u8[512]{0}', space=smem, size = 0x200, scoped, tag = 'prefetched SMEM operand 0']
  %s0 = inlined_call_operand.hbm [shape: f32[3], index: 0, kind: input, shape index: {}]
  %s1 = inlined_call_operand.hbm [shape: f32[7,16,128], index: 1, kind: input, shape index: {}]
  %s2 = inlined_call_operand.hbm [shape: f32[7,16,128], index: 2, kind: input, shape index: {}]
  %s3 = inlined_call_operand.hbm [shape: f32[7,16,128], index: 3, kind: input, shape index: {}]
  %s4 = inlined_call_operand.hbm [shape: f32[16,128], index: 4, kind: output, shape index: {}]
  %s5 = sld [smem:[#allocation0]]
  $region57: #{tpu_custom_call.1} parent=0
    _
  %s7 = ssub.s32 1, %s5
  %s8 = scalar_select 0, %s7, %s5
  %10 = dma.hbm_to_smem %s0, 16, [#allocation3], [#allocation2]
  %11 = dma.done [#allocation2], 16
  %12 = sfence
  $region1: #{tpu_custom_call.1} parent=0
    #allocation4 [shape = 'u8[8192]{0}', space=vmem, size = 0x2000, scoped, tag = 'input window, operand 1']
    #allocation5 [shape = 's32[2]{0}', space=sflag, size = 0x8, scoped, tag = 'scoped memory for tpu_custom_call.1']
    #allocation6 [shape = 's32[2]{0}', space=sflag, size = 0x8, scoped, tag = 'scoped memory for tpu_custom_call.1']
    #allocation7 [shape = 'u8[8192]{0}', space=vmem, size = 0x2000, scoped, tag = 'input window, operand 2']
    #allocation8 [shape = 's32[2]{0}', space=sflag, size = 0x8, scoped, tag = 'scoped memory for tpu_custom_call.1']
    #allocation9 [shape = 'u8[8192]{0}', space=vmem, size = 0x2000, scoped, tag = 'input window, operand 3']
    #allocation10 [shape = 'u8[8192]{0}', space=vmem, size = 0x2000, scoped, tag = 'output window, operand 0']
    %13 = vsyncpa [#allocation5], 0
    %s14 = scalar_lea.sflag [#allocation5], 1
    %15 = vsyncpa %s14, 0
    %16 = vsyncpa [#allocation8], 0
    %s17 = scalar_lea.sflag [#allocation8], 1
    %18 = vsyncpa %s17, 0
    %19 = vsyncpa [#allocation6], 0
    %s20 = scalar_lea.sflag [#allocation6], 1
    %21 = vsyncpa %s20, 0
    loop: start=0, step=1, limit=4
    $region2: #{tpu_custom_call.1} parent=1 // loop_pre_header
      _
    $region3: #{tpu_custom_call.1} parent=1 // loop_header
      %s23 = sphi 0, %s27
      %p24 = scmp.ge.s32.totalorder %s23, 4
      %s33 = sphi 0, %s35
      %s36 = sphi 0, %s33
      %s37 = sphi 0, %s36
      %s53 = sphi 0, %s37
      %s59 = sphi 0, %s61
      %s62 = sphi 0, %s59
      %s63 = sphi 0, %s62
      %s79 = sphi 0, %s63
      %s85 = sphi 0, %s87
      %s88 = sphi 0, %s85
      %s89 = sphi 0, %s88
      %s105 = sphi 0, %s89
      %s111 = sphi 0, %s113
      %s114 = sphi 0, %s111
      %s115 = sphi 0, %s114
      %s131 = sphi 0, %s115
    $region4: #{tpu_custom_call.1} parent=1 // loop_header_branch
      %26 = sbr.rel (%p24) target = $region8
    $region5: #{tpu_custom_call.1} parent=1 // loop_body
      %s28 = ssub.s32 %s23, 1
      %s29 = ssub.s32 %s23, 2
      %s30 = sadd.s32 %s23, 1
      %s31 = ssub.s32 %s23, %s30
      %p32 = scmp.eq.s32.totalorder %s31, 0
      %s34 = sadd.s32 %s33, 1
      %s35 = scalar_select %p32, %s33, %s34
      %p38 = pneg %p32
      %p39 = scmp.eq.s32.totalorder %s23, 1
      %p40 = por %p38, %p39
      %p41 = scmp.ne.s32.totalorder %s33, %s36
      %p42 = scmp.eq.s32.totalorder %s23, 0
      %p43 = por %p41, %p42
      %p44 = scmp.ne.s32.totalorder %s33, %s36
      %p45 = scmp.eq.s32.totalorder %s28, 1
      %p46 = por %p44, %p45
      %p47 = scmp.ne.s32.totalorder %s36, %s37
      %p48 = scmp.eq.s32.totalorder %s28, 0
      %p49 = por %p47, %p48
      %p50 = scmp.ne.s32.totalorder %s36, %s37
      %p51 = scmp.eq.s32.totalorder %s29, 1
      %p52 = por %p50, %p51
      %p54 = scmp.ne.s32.totalorder %s37, %s53
      %p55 = scmp.eq.s32.totalorder %s29, 0
      %p56 = por %p54, %p55
      %s57 = ssub.s32 %s23, %s30
      %p58 = scmp.eq.s32.totalorder %s57, 0
      %s60 = sadd.s32 %s59, 1
      %s61 = scalar_select %p58, %s59, %s60
      %p64 = pneg %p58
      %p65 = scmp.eq.s32.totalorder %s23, 1
      %p66 = por %p64, %p65
      %p67 = scmp.ne.s32.totalorder %s59, %s62
      %p68 = scmp.eq.s32.totalorder %s23, 0
      %p69 = por %p67, %p68
      %p70 = scmp.ne.s32.totalorder %s59, %s62
      %p71 = scmp.eq.s32.totalorder %s28, 1
      %p72 = por %p70, %p71
      %p73 = scmp.ne.s32.totalorder %s62, %s63
      %p74 = scmp.eq.s32.totalorder %s28, 0
      %p75 = por %p73, %p74
      %p76 = scmp.ne.s32.totalorder %s62, %s63
      %p77 = scmp.eq.s32.totalorder %s29, 1
      %p78 = por %p76, %p77
      %p80 = scmp.ne.s32.totalorder %s63, %s79
      %p81 = scmp.eq.s32.totalorder %s29, 0
      %p82 = por %p80, %p81
      %s83 = ssub.s32 %s23, %s30
      %p84 = scmp.eq.s32.totalorder %s83, 0
      %s86 = sadd.s32 %s85, 1
      %s87 = scalar_select %p84, %s85, %s86
      %p90 = pneg %p84
      %p91 = scmp.eq.s32.totalorder %s23, 1
      %p92 = por %p90, %p91
      %p93 = scmp.ne.s32.totalorder %s85, %s88
      %p94 = scmp.eq.s32.totalorder %s23, 0
      %p95 = por %p93, %p94
      %p96 = scmp.ne.s32.totalorder %s85, %s88
      %p97 = scmp.eq.s32.totalorder %s28, 1
      %p98 = por %p96, %p97
      %p99 = scmp.ne.s32.totalorder %s88, %s89
      %p100 = scmp.eq.s32.totalorder %s28, 0
      %p101 = por %p99, %p100
      %p102 = scmp.ne.s32.totalorder %s88, %s89
      %p103 = scmp.eq.s32.totalorder %s29, 1
      %p104 = por %p102, %p103
      %p106 = scmp.ne.s32.totalorder %s89, %s105
      %p107 = scmp.eq.s32.totalorder %s29, 0
      %p108 = por %p106, %p107
      %s109 = ssub.s32 %s23, %s30
      %p110 = scmp.eq.s32.totalorder %s109, 0
      %s112 = sadd.s32 %s111, 1
      %s113 = scalar_select %p110, %s111, %s112
      %p116 = pneg %p110
      %p117 = scmp.eq.s32.totalorder %s23, 1
      %p118 = por %p116, %p117
      %p119 = scmp.ne.s32.totalorder %s111, %s114
      %p120 = scmp.eq.s32.totalorder %s23, 0
      %p121 = por %p119, %p120
      %p122 = scmp.ne.s32.totalorder %s111, %s114
      %p123 = scmp.eq.s32.totalorder %s28, 1
      %p124 = por %p122, %p123
      %p125 = scmp.ne.s32.totalorder %s114, %s115
      %p126 = scmp.eq.s32.totalorder %s28, 0
      %p127 = por %p125, %p126
      %p128 = scmp.ne.s32.totalorder %s114, %s115
      %p129 = scmp.eq.s32.totalorder %s29, 1
      %p130 = por %p128, %p129
      %p132 = scmp.ne.s32.totalorder %s115, %s131
      %p133 = scmp.eq.s32.totalorder %s29, 0
      %p134 = por %p132, %p133
      %p135 = scmp.le.s32.totalorder 1, %s23
      %p136 = scmp.lt.s32.totalorder %s23, 3
      %p137 = pnand %p135, %p136
      %p138 = pneg %p137
      // Predicated region
      $region9: #{tpu_custom_call.1} parent=5 // pred_check
        _
      $region10: #{tpu_custom_call.1} parent=5 // pred_check_branch
        %140 = sbr.rel (%p137) target = $region12
      $region11: #{tpu_custom_call.1} parent=5 // pred_region
        %s141 = ssub.s32 %s23, 1
      $region12: #{tpu_custom_call.1} parent=5 // pred_fallthru
        _
      %p142 = scmp.lt.s32.totalorder %s23, 2
      // Predicated region
      $region13: #{tpu_custom_call.1} parent=5 // pred_check
        %p143 = pneg %p142
      $region14: #{tpu_custom_call.1} parent=5 // pred_check_branch
        %145 = sbr.rel (%p143) target = $region16
      $region15: #{tpu_custom_call.1} parent=5 // pred_region
        // Predicated region
        $region17: #{tpu_custom_call.1} parent=15 // pred_check
          %p146 = pneg %p43
        $region18: #{tpu_custom_call.1} parent=15 // pred_check_branch
          %148 = sbr.rel (%p146) target = $region20
        $region19: #{tpu_custom_call.1} parent=15 // pred_region
          %s149 = sand.u32 %s33, 1
          %s150 = scalar_lea.sflag [#allocation5], %s149
          %s151 = sand.u32 %s33, 1
          %s152 = smul.addr %s151, 8
          %s153 = scalar_lea.vmem [#allocation4], %s152
          %s155 = ssub.s32 128, 128
          %156 = vsyncadd %s150, %s155
          %s157 = sadd.s32 %s23, 8
          %s158 = smul.addr %s157, 128
          %s159 = scalar_lea.hbm %s1, %s158
          %s161 = sshll.u32 %s153, 4
          %s162 = int_to_ptr.vmem [resolvable:$true] %s161
          %164 = dma.hbm_to_vmem [thread:$0]  %s159, 128, %s162, %s150
        $region20: #{tpu_custom_call.1} parent=15 // pred_fallthru
          _
        // Predicated region
        $region21: #{tpu_custom_call.1} parent=15 // pred_check
          %p165 = pneg %p69
        $region22: #{tpu_custom_call.1} parent=15 // pred_check_branch
          %167 = sbr.rel (%p165) target = $region24
        $region23: #{tpu_custom_call.1} parent=15 // pred_region
          %s168 = sand.u32 %s23, 1
          %s169 = scalar_lea.sflag [#allocation8], %s168
          %s170 = sand.u32 %s59, 1
          %s171 = smul.addr %s170, 8
          %s172 = scalar_lea.vmem [#allocation7], %s171
          %s174 = ssub.s32 128, 128
          %175 = vsyncadd %s169, %s174
          %s176 = sadd.s32 %s23, 10
          %s177 = smul.addr %s176, 128
          %s178 = scalar_lea.hbm %s2, %s177
          %s180 = sshll.u32 %s172, 4
          %s181 = int_to_ptr.vmem [resolvable:$true] %s180
          %183 = dma.hbm_to_vmem [thread:$0]  %s178, 128, %s181, %s169
        $region24: #{tpu_custom_call.1} parent=15 // pred_fallthru
          _
        // Predicated region
        $region25: #{tpu_custom_call.1} parent=15 // pred_check
          %p184 = pneg %p95
        $region26: #{tpu_custom_call.1} parent=15 // pred_check_branch
          %186 = sbr.rel (%p184) target = $region28
        $region27: #{tpu_custom_call.1} parent=15 // pred_region
          %s187 = sand.u32 %s23, 1
          %s188 = scalar_lea.sflag [#allocation8], %s187
          %s189 = sand.u32 %s85, 1
          %s190 = smul.addr %s189, 8
          %s191 = scalar_lea.vmem [#allocation9], %s190
          %s193 = ssub.s32 128, 128
          %194 = vsyncadd %s188, %s193
          %s195 = sadd.s32 %s23, 12
          %s196 = smul.addr %s195, 128
          %s197 = scalar_lea.hbm %s3, %s196
          %s199 = sshll.u32 %s191, 4
          %s200 = int_to_ptr.vmem [resolvable:$true] %s199
          %202 = dma.hbm_to_vmem [thread:$0]  %s197, 128, %s200, %s188
        $region28: #{tpu_custom_call.1} parent=15 // pred_fallthru
          _
      $region16: #{tpu_custom_call.1} parent=5 // pred_fallthru
        _
      %p203 = scmp.le.s32.totalorder 1, %s23
      %p204 = scmp.lt.s32.totalorder %s23, 3
      %p205 = pnand %p203, %p204
      %p206 = pneg %p205
      // Predicated region
      $region29: #{tpu_custom_call.1} parent=5 // pred_check
        _
      $region30: #{tpu_custom_call.1} parent=5 // pred_check_branch
        %208 = sbr.rel (%p205) target = $region32
      $region31: #{tpu_custom_call.1} parent=5 // pred_region
        %s209 = ssub.s32 %s23, 1
        %s210 = sand.u32 %s36, 1
        %s211 = scalar_lea.sflag [#allocation5], %s210
        %s212 = sand.u32 %s36, 1
        %s213 = smul.addr %s212, 8
        %s214 = scalar_lea.vmem [#allocation4], %s213
        // Predicated region
        $region33: #{tpu_custom_call.1} parent=31 // pred_check
          %p215 = pneg %p49
        $region34: #{tpu_custom_call.1} parent=31 // pred_check_branch
          %217 = sbr.rel (%p215) target = $region36
        $region35: #{tpu_custom_call.1} parent=31 // pred_region
          %218 = dma.done %s211, 128
        $region36: #{tpu_custom_call.1} parent=31 // pred_fallthru
          _
        %s219 = sand.u32 %s28, 1
        %s220 = scalar_lea.sflag [#allocation8], %s219
        %s221 = sand.u32 %s62, 1
        %s222 = smul.addr %s221, 8
        %s223 = scalar_lea.vmem [#allocation7], %s222
        // Predicated region
        $region37: #{tpu_custom_call.1} parent=31 // pred_check
          %p224 = pneg %p75
        $region38: #{tpu_custom_call.1} parent=31 // pred_check_branch
          %226 = sbr.rel (%p224) target = $region40
        $region39: #{tpu_custom_call.1} parent=31 // pred_region
          %227 = dma.done %s220, 128
        $region40: #{tpu_custom_call.1} parent=31 // pred_fallthru
          _
        %s228 = sand.u32 %s28, 1
        %s229 = scalar_lea.sflag [#allocation8], %s228
        %s230 = sand.u32 %s88, 1
        %s231 = smul.addr %s230, 8
        %s232 = scalar_lea.vmem [#allocation9], %s231
        // Predicated region
        $region41: #{tpu_custom_call.1} parent=31 // pred_check
          %p233 = pneg %p101
        $region42: #{tpu_custom_call.1} parent=31 // pred_check_branch
          %235 = sbr.rel (%p233) target = $region44
        $region43: #{tpu_custom_call.1} parent=31 // pred_region
          %236 = dma.done %s229, 128
        $region44: #{tpu_custom_call.1} parent=31 // pred_fallthru
          _
        %s237 = sand.u32 %s36, 1
        %s238 = scalar_lea.sflag [#allocation5], %s237
        %s239 = sand.u32 %s36, 1
        %s240 = smul.addr %s239, 8
        %s241 = scalar_lea.vmem [#allocation4], %s240
        %p242 = pneg %p49
        %p243 = pneg %p46
        %s244 = sand.u32 %s28, 1
        %s245 = scalar_lea.sflag [#allocation8], %s244
        %s246 = sand.u32 %s62, 1
        %s247 = smul.addr %s246, 8
        %s248 = scalar_lea.vmem [#allocation7], %s247
        %p249 = pneg %p75
        %p250 = pneg %p72
        %s251 = sand.u32 %s28, 1
        %s252 = scalar_lea.sflag [#allocation8], %s251
        %s253 = sand.u32 %s88, 1
        %s254 = smul.addr %s253, 8
        %s255 = scalar_lea.vmem [#allocation9], %s254
        %p256 = pneg %p101
        %p257 = pneg %p98
        %p258 = pneg %p127
        %p259 = pneg %p124
        %s260 = sand.u32 %s114, 1
        %s261 = scalar_lea.sflag [#allocation6], %s260
        %s262 = sand.u32 %s114, 1
        %s263 = smul.addr %s262, 8
        %s264 = scalar_lea.vmem [#allocation10], %s263
        %s265 = sld [smem:[#allocation3]]
        %v266 = vld [vmem:[%s214] sm:$0xff]
        %v267 = vstv %s265
        %v268 = vmul.f32 %v267, %v266
        %s269 = sld [smem:[#allocation3 + $0x1]]
        %v270 = vld [vmem:[%s223] sm:$0xff]
        %v271 = vstv %s269
        %v272 = vmul.f32 %v271, %v270
        %v273 = vadd.f32 %v268, %v272
        %s274 = sld [smem:[#allocation3 + $0x2]]
        %v275 = vld [vmem:[%s232] sm:$0xff]
        %v276 = vstv %s274
        %v277 = vmul.f32 %v276, %v275
        %v278 = vadd.f32 %v273, %v277
        %279 = vst [vmem:[%s264] sm:$0xff] %v278
        %s280 = sand.u32 %s114, 1
        %s281 = scalar_lea.sflag [#allocation6], %s280
        %s282 = sand.u32 %s114, 1
        %s283 = smul.addr %s282, 8
        %s284 = scalar_lea.vmem [#allocation10], %s283
        // Predicated region
        $region45: #{tpu_custom_call.1} parent=31 // pred_check
          %p285 = pneg %p124
        $region46: #{tpu_custom_call.1} parent=31 // pred_check_branch
          %287 = sbr.rel (%p285) target = $region48
        $region47: #{tpu_custom_call.1} parent=31 // pred_region
          %s289 = ssub.s32 128, 128
          %290 = vsyncadd %s281, %s289
          %s291 = smul.addr %s28, 128
          %s292 = scalar_lea.hbm %s4, %s291
          %s294 = sshll.u32 %s284, 4
          %s295 = int_to_ptr.vmem [resolvable:$true] %s294
          %297 = dma.vmem_to_hbm [thread:$0]  %s295, 128, %s292, %s281
        $region48: #{tpu_custom_call.1} parent=31 // pred_fallthru
          _
      $region32: #{tpu_custom_call.1} parent=5 // pred_fallthru
        _
      %p298 = scmp.le.s32.totalorder 2, %s23
      // Predicated region
      $region49: #{tpu_custom_call.1} parent=5 // pred_check
        %p299 = pneg %p298
      $region50: #{tpu_custom_call.1} parent=5 // pred_check_branch
        %301 = sbr.rel (%p299) target = $region52
      $region51: #{tpu_custom_call.1} parent=5 // pred_region
        %s302 = ssub.s32 %s23, 2
        // Predicated region
        $region53: #{tpu_custom_call.1} parent=51 // pred_check
          %p303 = pneg %p130
        $region54: #{tpu_custom_call.1} parent=51 // pred_check_branch
          %305 = sbr.rel (%p303) target = $region56
        $region55: #{tpu_custom_call.1} parent=51 // pred_region
          %s306 = sand.u32 %s115, 1
          %s307 = scalar_lea.sflag [#allocation6], %s306
          %s308 = sand.u32 %s115, 1
          %s309 = smul.addr %s308, 8
          %s310 = scalar_lea.vmem [#allocation10], %s309
          %311 = dma.done %s307, 128
        $region56: #{tpu_custom_call.1} parent=51 // pred_fallthru
          _
      $region52: #{tpu_custom_call.1} parent=5 // pred_fallthru
        _
    $region6: #{tpu_custom_call.1} parent=1 // loop_footer
      %s27 = sadd.s32 1, %s23
    $region7: #{tpu_custom_call.1} parent=1 // loop_footer_branch
      %22 = sbr.rel target = $region3
    $region8: #{tpu_custom_call.1} parent=1 // loop_exit
      _
    %312 = vsyncpa [#allocation5], 1
    %s313 = scalar_lea.sflag [#allocation5], 1
    %314 = vsyncpa %s313, 1
    %315 = vsyncpa [#allocation8], 1
    %s316 = scalar_lea.sflag [#allocation8], 1
    %317 = vsyncpa %s316, 1
    %318 = vsyncpa [#allocation6], 1
    %s319 = scalar_lea.sflag [#allocation6], 1
    %320 = vsyncpa %s319, 1

</llo_original>
